<compile_context>
chip_gen: v5e
topology: v5e:2x2
jax: 0.10.0
libtpu: 0.0.40
codegen_flags: <defaults>
</compile_context>

<pallas_src>
import functools

import jax
import jax.numpy as jnp
from jax.experimental import pallas as pl
from jax.experimental.pallas import tpu as pltpu


_SUBLANE = 8
_MAX_TILE_ROWS = 2048          # per-block row cap (sweepable)


# ------------------------------ VMEM / tiling --------------------------------

@functools.lru_cache(maxsize=1)
def _vmem_limit_bytes():
    """Per-generation VMEM limit: ~96 MiB on 128 MiB chips, ~48 MiB on v7x."""
    cap = 64 * 1024 * 1024
    try:
        info = pltpu.get_tpu_info()
        cap = int(getattr(info, "vmem_capacity_bytes", cap) or cap)
    except Exception:
        pass
    return min((cap * 3) // 4, 96 * 1024 * 1024)


def _tile_vmem_budget():
    # Leave headroom for Mosaic internal scratch / semaphores.
    return max(_vmem_limit_bytes() - 8 * 1024 * 1024, 8 * 1024 * 1024)


def _round_up(x, m):
    return pl.cdiv(x, m) * m


def _pick_tile_rows(rows, bytes_per_row, fixed_bytes):
    """Largest multiple-of-8 row tile whose full footprint fits the budget."""
    avail = max(_tile_vmem_budget() - fixed_bytes, 0)
    t = avail // max(bytes_per_row, 1)
    t = min(t, _MAX_TILE_ROWS, _round_up(rows, _SUBLANE))
    t = max(_SUBLANE, (t // _SUBLANE) * _SUBLANE)
    return int(t)


def _pick_block_k(feat):
    """Reduction tile for W (lane-aligned).  Falls back to un-tiled W."""
    for bk in (512, 256, 128):
        if feat % bk == 0:
            return bk
    return feat


# ------------------------------ Pallas kernels -------------------------------

def _layernorm_kernel(x_ref, g_ref, b_ref, o_ref, *, eps, feat):
    x = x_ref[...].astype(jnp.float32)                       # (tile_rows, feat)
    mean = jnp.mean(x, axis=-1, keepdims=True)
    diff = x - mean
    # unbiased variance (N-1) + eps added to std: matches torch.Tensor.std(-1)
    var = jnp.sum(diff * diff, axis=-1, keepdims=True) / (feat - 1)
    inv = pl.reciprocal(jnp.sqrt(var) + eps)                  # exact
    y = diff * inv * g_ref[...].astype(jnp.float32) + b_ref[...].astype(jnp.float32)
    o_ref[...] = y.astype(o_ref.dtype)


def _ln_linear_residual_kernel(x_ref, g_ref, b_ref, w_ref, wb_ref, o_ref,
                               normed_ref, acc_ref, *, eps, feat, block_k, n_k):
    """Fused: out = x + (LayerNorm(x) @ W + bias), W tiled over the k grid axis."""
    k = pl.program_id(1)

    @pl.when(k == 0)
    def _():
        x = x_ref[...].astype(jnp.float32)
        mean = jnp.mean(x, axis=-1, keepdims=True)
        diff = x - mean
        var = jnp.sum(diff * diff, axis=-1, keepdims=True) / (feat - 1)
        inv = pl.reciprocal(jnp.sqrt(var) + eps, approx=True)   # EUP slot, ~free
        normed = (diff * inv * g_ref[...].astype(jnp.float32)
                  + b_ref[...].astype(jnp.float32))
        normed_ref[...] = normed.astype(normed_ref.dtype)       # W's dtype for MXU
        acc_ref[...] = jnp.zeros_like(acc_ref)

    if n_k == 1:
        lhs = normed_ref[...]
    else:
        k_start = pl.multiple_of(k * block_k, block_k)
        lhs = normed_ref[:, pl.ds(k_start, block_k)]
    acc_ref[...] += jnp.dot(lhs, w_ref[...], preferred_element_type=jnp.float32)

    @pl.when(k == n_k - 1)
    def _():
        x = x_ref[...].astype(jnp.float32)
        o_ref[...] = (x + acc_ref[...]
                      + wb_ref[...].astype(jnp.float32)).astype(o_ref.dtype)


# -------------------------------- wrappers ------------------------------------

def pallas_layernorm(x2d, gamma, beta, eps=1e-6):
    rows, feat = x2d.shape
    itemsize = jnp.dtype(x2d.dtype).itemsize
    bytes_per_row = feat * itemsize * (2 + 2)      # x + out tiles, double buffered
    fixed = 2 * feat * 4                           # gamma + beta
    tile_rows = _pick_tile_rows(rows, bytes_per_row, fixed)

    g2d = gamma.reshape(1, feat).astype(jnp.float32)
    b2d = beta.reshape(1, feat).astype(jnp.float32)
    kern = functools.partial(_layernorm_kernel, eps=eps, feat=feat)
    # TODO(synk): for feat < 128 the output stores are masked (vst.msk); a
    # lane-dense repack of rows into lanes would help if such shapes mattered.
    return pl.pallas_call(
        kern,
        out_shape=jax.ShapeDtypeStruct((rows, feat), x2d.dtype),
        grid=(pl.cdiv(rows, tile_rows),),
        in_specs=[
            pl.BlockSpec((tile_rows, feat), lambda i: (i, 0)),
            pl.BlockSpec((1, feat), lambda i: (0, 0)),
            pl.BlockSpec((1, feat), lambda i: (0, 0)),
        ],
        out_specs=pl.BlockSpec((tile_rows, feat), lambda i: (i, 0)),
        compiler_params=pltpu.CompilerParams(
            dimension_semantics=("parallel",),
            vmem_limit_bytes=_vmem_limit_bytes(),
        ),
    )(x2d, g2d, b2d)


def pallas_sublayer_connection_linear(x, gamma, beta, W, bias, eps=1e-6):
    """Fused SublayerConnection for a linear sublayer: x + (LN(x) @ W + bias).

    W is used in its native dtype (bf16 feeds the MXU at bf16 rate) and its
    reduction dimension is streamed over the trailing grid axis.
    """
    b, s, f = x.shape
    rows = b * s
    x2d = x.reshape(rows, f)
    assert W.shape == (f, f), "sublayer weight must be (features, features)"

    block_k = _pick_block_k(f)
    n_k = f // block_k
    x_item = jnp.dtype(x.dtype).itemsize
    w_item = jnp.dtype(W.dtype).itemsize

    # Per-row footprint: x tile + out tile (double buffered) + normed scratch
    # (W dtype) + f32 accumulator scratch.
    bytes_per_row = f * (2 * x_item + 2 * x_item + w_item + 4)
    # Fixed footprint: W k-block (double buffered) + gamma/beta/bias.
    fixed = block_k * f * w_item * 2 + 3 * f * 4
    tile_rows = _pick_tile_rows(rows, bytes_per_row, fixed)

    g2d = gamma.reshape(1, f).astype(jnp.float32)
    b2d = beta.reshape(1, f).astype(jnp.float32)
    wb2d = bias.reshape(1, f).astype(jnp.float32)

    kern = functools.partial(_ln_linear_residual_kernel, eps=eps, feat=f,
                             block_k=block_k, n_k=n_k)
    out = pl.pallas_call(
        kern,
        out_shape=jax.ShapeDtypeStruct((rows, f), x.dtype),
        grid=(pl.cdiv(rows, tile_rows), n_k),
        in_specs=[
            pl.BlockSpec((tile_rows, f), lambda i, k: (i, 0)),   # x (resident over k)
            pl.BlockSpec((1, f), lambda i, k: (0, 0)),           # gamma
            pl.BlockSpec((1, f), lambda i, k: (0, 0)),           # beta
            pl.BlockSpec((block_k, f), lambda i, k: (k, 0)),     # W k-block (native dtype)
            pl.BlockSpec((1, f), lambda i, k: (0, 0)),           # bias
        ],
        out_specs=pl.BlockSpec((tile_rows, f), lambda i, k: (i, 0)),
        scratch_shapes=[
            pltpu.VMEM((tile_rows, f), W.dtype),       # LayerNorm(x) in MXU lhs dtype
            pltpu.VMEM((tile_rows, f), jnp.float32),   # matmul accumulator
        ],
        compiler_params=pltpu.CompilerParams(
            dimension_semantics=("parallel", "arbitrary"),
            vmem_limit_bytes=_vmem_limit_bytes(),
        ),
    )(x2d, g2d, b2d, W, wb2d)
    return out.reshape(b, s, f)


def sublayer_connection(x, sublayer_fn, gamma, beta, eps=1e-6):
    """General path: x + sublayer_fn(LayerNorm(x)) for an arbitrary callable.

    LayerNorm runs as a Pallas kernel; the residual add is left to plain JAX
    so XLA fuses it into the sublayer's output epilogue.
    """
    b, s, f = x.shape
    normed = pallas_layernorm(x.reshape(b * s, f), gamma, beta, eps=eps)
    return x + sublayer_fn(normed.reshape(b, s, f))   # dropout = identity (eval)


# -------------------------------- reference -----------------------------------

def _ref_layernorm(x, gamma, beta, eps=1e-6):
    mean = jnp.mean(x, axis=-1, keepdims=True)
    diff = x - mean
    var = jnp.sum(diff * diff, axis=-1, keepdims=True) / (x.shape[-1] - 1)
    return gamma * diff / (jnp.sqrt(var) + eps) + beta


def _ref_sublayer_connection(x, sublayer_fn, gamma, beta, eps=1e-6):
    return x + sublayer_fn(_ref_layernorm(x, gamma, beta, eps))


# ----------------------------------- main --------------------------------------

if __name__ == "__main__":
    key = jax.random.PRNGKey(0)
    k_x, k_w, k_b = jax.random.split(key, 3)

    batch, seq, features = 2, 8, 32
    x = jax.random.normal(k_x, (batch, seq, features), dtype=jnp.float32)

    # LayerNorm parameters (__init__: ones / zeros) -- deterministically
    # perturbed so the affine part is actually exercised.
    gamma = jnp.ones((features,), jnp.float32) + \
        0.1 * jnp.arange(features, dtype=jnp.float32) / features
    beta = 0.01 * jnp.arange(features, dtype=jnp.float32)

    # Example "sublayer": deterministic linear layer (module takes any callable).
    W = jax.random.normal(k_w, (features, features), dtype=jnp.float32) * 0.05
    bias = jax.random.normal(k_b, (features,), dtype=jnp.float32) * 0.05
    sublayer_fn = lambda h: jnp.dot(h, W, precision=jax.lax.Precision.HIGHEST) + bias

    ref = _ref_sublayer_connection(x, sublayer_fn, gamma, beta)

    # 1) fully fused path: LN + linear sublayer + residual in a single kernel.
    out_fused = jax.block_until_ready(
        pallas_sublayer_connection_linear(x, gamma, beta, W, bias))
    assert out_fused.shape == x.shape and out_fused.dtype == x.dtype
    # tolerance: approx-EUP reciprocal + MXU pass precision vs HIGHEST reference
    assert jnp.allclose(out_fused, ref, atol=5e-3, rtol=5e-3), "fused f32 mismatch"

    # 2) same fused path with native bf16 weights feeding the MXU.
    out_bf16 = jax.block_until_ready(
        pallas_sublayer_connection_linear(x, gamma, beta,
                                          W.astype(jnp.bfloat16), bias))
    assert out_bf16.shape == x.shape and out_bf16.dtype == x.dtype
    assert jnp.allclose(out_bf16, ref, atol=5e-2, rtol=5e-2), "fused bf16 mismatch"

    # 3) general path: Pallas LN, arbitrary sublayer, XLA-fused residual add.
    out_gen = jax.block_until_ready(
        sublayer_connection(x, sublayer_fn, gamma, beta))
    assert out_gen.shape == x.shape and out_gen.dtype == x.dtype
    assert jnp.allclose(out_gen, ref, atol=1e-5, rtol=1e-5), "general mismatch"

    print("KERNEL_OK")
</pallas_src>

<mosaic_0001>
module attributes {stable_mosaic.version = 11 : i64} {
  func.func @_ln_linear_residual_kernel(%arg0: i32, %arg1: i32, %arg2: memref<16x32xf32, #tpu.memory_space<vmem>>, %arg3: memref<1x32xf32, #tpu.memory_space<vmem>>, %arg4: memref<1x32xf32, #tpu.memory_space<vmem>>, %arg5: memref<32x32xf32, #tpu.memory_space<vmem>>, %arg6: memref<1x32xf32, #tpu.memory_space<vmem>>, %arg7: memref<16x32xf32, #tpu.memory_space<vmem>>, %arg8: memref<16x32xf32, #tpu.memory_space<vmem>>, %arg9: memref<16x32xf32, #tpu.memory_space<vmem>>) attributes {dimension_semantics = [#tpu.dimension_semantics<parallel>, #tpu.dimension_semantics<arbitrary>], iteration_bounds = array<i64: 1, 1>, scalar_prefetch = 0 : i64, scratch_operands = 2 : i64, tpu.core_type = #tpu.core_type<tc>, window_params = [{transform_indices = @transform_0, window_bounds = array<i64: 16, 32>}, {pipeline_mode = #tpu.pipeline_mode<synchronous>, transform_indices = @transform_1, window_bounds = array<i64: 1, 32>}, {pipeline_mode = #tpu.pipeline_mode<synchronous>, transform_indices = @transform_2, window_bounds = array<i64: 1, 32>}, {transform_indices = @transform_3, window_bounds = array<i64: 32, 32>}, {pipeline_mode = #tpu.pipeline_mode<synchronous>, transform_indices = @transform_4, window_bounds = array<i64: 1, 32>}, {transform_indices = @transform_5, window_bounds = array<i64: 16, 32>}]} {
    %c0_i32 = arith.constant 0 : i32
    %0 = arith.cmpi eq, %arg1, %c0_i32 : i32
    %1 = arith.extui %0 : i1 to i32
    %c0_i32_0 = arith.constant 0 : i32
    %2 = arith.cmpi ne, %1, %c0_i32_0 : i32
    scf.if %2 {
      %c0_10 = arith.constant 0 : index
      %c0_11 = arith.constant 0 : index
      %12 = vector.load %arg2[%c0_10, %c0_11] : memref<16x32xf32, #tpu.memory_space<vmem>>, vector<16x32xf32>
      %cst_12 = arith.constant dense<0.000000e+00> : vector<16xf32>
      %13 = vector.multi_reduction <add>, %12, %cst_12 [1] : vector<16x32xf32> to vector<16xf32>
      %14 = vector.shape_cast %13 : vector<16xf32> to vector<16x1xf32>
      %cst_13 = arith.constant 3.200000e+01 : f32
      %15 = vector.broadcast %cst_13 : f32 to vector<16x1xf32>
      %16 = arith.divf %14, %15 : vector<16x1xf32>
      %17 = vector.broadcast %16 : vector<16x1xf32> to vector<16x32xf32>
      %18 = arith.subf %12, %17 : vector<16x32xf32>
      %19 = arith.mulf %18, %18 : vector<16x32xf32>
      %cst_14 = arith.constant dense<0.000000e+00> : vector<16xf32>
      %20 = vector.multi_reduction <add>, %19, %cst_14 [1] : vector<16x32xf32> to vector<16xf32>
      %21 = vector.shape_cast %20 : vector<16xf32> to vector<16x1xf32>
      %cst_15 = arith.constant 3.100000e+01 : f32
      %22 = vector.broadcast %cst_15 : f32 to vector<16x1xf32>
      %23 = arith.divf %21, %22 : vector<16x1xf32>
      %24 = math.sqrt %23 : vector<16x1xf32>
      %cst_16 = arith.constant 9.99999997E-7 : f32
      %25 = vector.broadcast %cst_16 : f32 to vector<16x1xf32>
      %26 = arith.addf %24, %25 : vector<16x1xf32>
      %27 = tpu.reciprocal %26 {approx = true} : vector<16x1xf32> -> vector<16x1xf32>
      %28 = vector.broadcast %27 : vector<16x1xf32> to vector<16x32xf32>
      %29 = arith.mulf %18, %28 : vector<16x32xf32>
      %c0_17 = arith.constant 0 : index
      %c0_18 = arith.constant 0 : index
      %30 = vector.load %arg3[%c0_17, %c0_18] : memref<1x32xf32, #tpu.memory_space<vmem>>, vector<1x32xf32>
      %31 = vector.broadcast %30 : vector<1x32xf32> to vector<16x32xf32>
      %32 = arith.mulf %29, %31 : vector<16x32xf32>
      %c0_19 = arith.constant 0 : index
      %c0_20 = arith.constant 0 : index
      %33 = vector.load %arg4[%c0_19, %c0_20] : memref<1x32xf32, #tpu.memory_space<vmem>>, vector<1x32xf32>
      %34 = vector.broadcast %33 : vector<1x32xf32> to vector<16x32xf32>
      %35 = arith.addf %32, %34 : vector<16x32xf32>
      %c0_21 = arith.constant 0 : index
      %c0_22 = arith.constant 0 : index
      %36 = vector.load %arg8[%c0_21, %c0_22] : memref<16x32xf32, #tpu.memory_space<vmem>>, vector<16x32xf32>
      tpu.vector_store %arg8[%c0_21, %c0_22], %35 {strides = array<i32>} : memref<16x32xf32, #tpu.memory_space<vmem>>, vector<16x32xf32>,
      %cst_23 = arith.constant 0.000000e+00 : f32
      %37 = vector.broadcast %cst_23 : f32 to vector<16x32xf32>
      %c0_24 = arith.constant 0 : index
      %c0_25 = arith.constant 0 : index
      %38 = vector.load %arg9[%c0_24, %c0_25] : memref<16x32xf32, #tpu.memory_space<vmem>>, vector<16x32xf32>
      tpu.vector_store %arg9[%c0_24, %c0_25], %37 {strides = array<i32>} : memref<16x32xf32, #tpu.memory_space<vmem>>, vector<16x32xf32>,
    } else {
    }
    %c0 = arith.constant 0 : index
    %c0_1 = arith.constant 0 : index
    %3 = vector.load %arg8[%c0, %c0_1] : memref<16x32xf32, #tpu.memory_space<vmem>>, vector<16x32xf32>
    %c0_2 = arith.constant 0 : index
    %c0_3 = arith.constant 0 : index
    %4 = vector.load %arg9[%c0_2, %c0_3] : memref<16x32xf32, #tpu.memory_space<vmem>>, vector<16x32xf32>
    %c0_4 = arith.constant 0 : index
    %c0_5 = arith.constant 0 : index
    %5 = vector.load %arg5[%c0_4, %c0_5] : memref<32x32xf32, #tpu.memory_space<vmem>>, vector<32x32xf32>
    %cst = arith.constant dense<0.000000e+00> : vector<16x32xf32>
    %6 = tpu.matmul %3, %5, %cst {dimension_numbers = #tpu.dot_dimension_numbers<[1], [0], [0], [1], [0, 0, 1, 1], [], []>} : vector<16x32xf32>, vector<32x32xf32>, vector<16x32xf32> -> vector<16x32xf32>
    %7 = arith.addf %4, %6 : vector<16x32xf32>
    %c0_6 = arith.constant 0 : index
    %c0_7 = arith.constant 0 : index
    %8 = vector.load %arg9[%c0_6, %c0_7] : memref<16x32xf32, #tpu.memory_space<vmem>>, vector<16x32xf32>
    tpu.vector_store %arg9[%c0_6, %c0_7], %7 {strides = array<i32>} : memref<16x32xf32, #tpu.memory_space<vmem>>, vector<16x32xf32>,
    %c0_i32_8 = arith.constant 0 : i32
    %9 = arith.cmpi eq, %arg1, %c0_i32_8 : i32
    %10 = arith.extui %9 : i1 to i32
    %c0_i32_9 = arith.constant 0 : i32
    %11 = arith.cmpi ne, %10, %c0_i32_9 : i32
    scf.if %11 {
      %c0_10 = arith.constant 0 : index
      %c0_11 = arith.constant 0 : index
      %12 = vector.load %arg2[%c0_10, %c0_11] : memref<16x32xf32, #tpu.memory_space<vmem>>, vector<16x32xf32>
      %c0_12 = arith.constant 0 : index
      %c0_13 = arith.constant 0 : index
      %13 = vector.load %arg9[%c0_12, %c0_13] : memref<16x32xf32, #tpu.memory_space<vmem>>, vector<16x32xf32>
      %14 = arith.addf %12, %13 : vector<16x32xf32>
      %c0_14 = arith.constant 0 : index
      %c0_15 = arith.constant 0 : index
      %15 = vector.load %arg6[%c0_14, %c0_15] : memref<1x32xf32, #tpu.memory_space<vmem>>, vector<1x32xf32>
      %16 = vector.broadcast %15 : vector<1x32xf32> to vector<16x32xf32>
      %17 = arith.addf %14, %16 : vector<16x32xf32>
      %c0_16 = arith.constant 0 : index
      %c0_17 = arith.constant 0 : index
      %18 = vector.load %arg7[%c0_16, %c0_17] : memref<16x32xf32, #tpu.memory_space<vmem>>, vector<16x32xf32>
      tpu.vector_store %arg7[%c0_16, %c0_17], %17 {strides = array<i32>} : memref<16x32xf32, #tpu.memory_space<vmem>>, vector<16x32xf32>,
    } else {
    }
    return
  }
  func.func @transform_0(%arg0: i32, %arg1: i32) -> (i32, i32) {
    %c0_i32 = arith.constant 0 : i32
    %c0_i32_0 = arith.constant 0 : i32
    return %arg0, %c0_i32 : i32, i32
  }
  func.func @transform_1(%arg0: i32, %arg1: i32) -> (i32, i32) {
    %c0_i32 = arith.constant 0 : i32
    %c0_i32_0 = arith.constant 0 : i32
    %c0_i32_1 = arith.constant 0 : i32
    return %c0_i32, %c0_i32_0 : i32, i32
  }
  func.func @transform_2(%arg0: i32, %arg1: i32) -> (i32, i32) {
    %c0_i32 = arith.constant 0 : i32
    %c0_i32_0 = arith.constant 0 : i32
    %c0_i32_1 = arith.constant 0 : i32
    return %c0_i32, %c0_i32_0 : i32, i32
  }
  func.func @transform_3(%arg0: i32, %arg1: i32) -> (i32, i32) {
    %c0_i32 = arith.constant 0 : i32
    %c0_i32_0 = arith.constant 0 : i32
    return %arg1, %c0_i32 : i32, i32
  }
  func.func @transform_4(%arg0: i32, %arg1: i32) -> (i32, i32) {
    %c0_i32 = arith.constant 0 : i32
    %c0_i32_0 = arith.constant 0 : i32
    %c0_i32_1 = arith.constant 0 : i32
    return %c0_i32, %c0_i32_0 : i32, i32
  }
  func.func @transform_5(%arg0: i32, %arg1: i32) -> (i32, i32) {
    %c0_i32 = arith.constant 0 : i32
    %c0_i32_0 = arith.constant 0 : i32
    return %arg0, %c0_i32 : i32, i32
  }
}

</mosaic_0001>

<llo_original>
// kernel: tpu_custom_call.1
$region0: #{tpu_custom_call.1}
  #allocation0 [shape = 'u32[]', space=smem, size = 0x4, offset = 0x4, fixed_abs, tag = 'smem constant byte address 0x4 - core index']
  #allocation1 [shape = 'u32[72,128]{1,0:T(1,128)}', space=vmem, size = 0x9000, scoped, tag = 'internal scratch']
  #allocation2 [shape = 'f32[16,32]{1,0:T(8,128)}', space=vmem, size = 0x2000, scoped, tag = 'scratch operand']
  #allocation3 [shape = 'f32[16,32]{1,0:T(8,128)}', space=vmem, size = 0x2000, scoped, tag = 'scratch operand']
  %s0 = inlined_call_operand.hbm [shape: f32[16,32], index: 0, kind: input, shape index: {}]
  %s1 = inlined_call_operand.hbm [shape: f32[1,32], index: 1, kind: input, shape index: {}]
  %s2 = inlined_call_operand.vmem [shape: f32[1,32], index: 2, kind: input, shape index: {}]
  %s3 = inlined_call_operand.hbm [shape: f32[32,32], index: 3, kind: input, shape index: {}]
  %s4 = inlined_call_operand.vmem [shape: f32[1,32], index: 4, kind: input, shape index: {}]
  %s5 = inlined_call_operand.hbm [shape: f32[16,32], index: 5, kind: output, shape index: {}]
  %s6 = sld [smem:[#allocation0]]
  $region50: #{tpu_custom_call.1} parent=0
    _
  %s8 = ssub.s32 1, %s6
  %s9 = scalar_select 0, %s8, %s6
  $region1: #{tpu_custom_call.1} parent=0
    #allocation4 [shape = 'u8[8192]{0}', space=vmem, size = 0x2000, scoped, tag = 'input window, operand 0, single buffered']
    #allocation5 [shape = 's32[1]{0}', space=sflag, size = 0x4, scoped, tag = 'scoped memory for tpu_custom_call.1']
    #allocation6 [shape = 's32[1]{0}', space=sflag, size = 0x4, scoped, tag = 'scoped memory for tpu_custom_call.1']
    #allocation7 [shape = 'u8[512]{0}', space=vmem, size = 0x400, scoped, tag = 'input window, operand 1, single buffered']
    #allocation8 [shape = 's32[1]{0}', space=sflag, size = 0x4, scoped, tag = 'scoped memory for tpu_custom_call.1']
    #allocation9 [shape = 'u8[16384]{0}', space=vmem, size = 0x4000, scoped, tag = 'input window, operand 3, single buffered']
    #allocation10 [shape = 'u8[8192]{0}', space=vmem, size = 0x2000, scoped, tag = 'output window, operand 0, single buffered']
    %10 = vsyncpa [#allocation5], 0
    %11 = vsyncpa [#allocation8], 0
    %12 = vsyncpa [#allocation6], 0
    // Predicated region
    $region2: #{tpu_custom_call.1} parent=1 // pred_check
      _
    $region3: #{tpu_custom_call.1} parent=1 // pred_check_branch
      %14 = sbr.rel (0) target = $region5
    $region4: #{tpu_custom_call.1} parent=1 // pred_region
      %16 = vsyncadd [#allocation5], 0
      %s17 = sshll.u32 %s0, 4
      %s18 = int_to_ptr.hbm [resolvable:$true] %s17
      %s19 = sshll.u32 [#allocation4], 4
      %s20 = int_to_ptr.vmem [resolvable:$true] %s19
      %25 = dma.hbm_to_vmem [thread:$0]  %s18, 256, %s20, [#allocation5], 128, 128, 8
    $region5: #{tpu_custom_call.1} parent=1 // pred_fallthru
      _
    // Predicated region
    $region6: #{tpu_custom_call.1} parent=1 // pred_check
      _
    $region7: #{tpu_custom_call.1} parent=1 // pred_check_branch
      %27 = sbr.rel (0) target = $region9
    $region8: #{tpu_custom_call.1} parent=1 // pred_region
      %29 = vsyncadd [#allocation8], 0
      %s31 = sshll.u32 %s1, 4
      %s32 = int_to_ptr.hbm [resolvable:$true] %s31
      %s33 = sshll.u32 [#allocation7], 4
      %s34 = int_to_ptr.vmem [resolvable:$true] %s33
      %36 = dma.hbm_to_vmem [thread:$0]  %s32, 16, %s34, [#allocation8]
    $region9: #{tpu_custom_call.1} parent=1 // pred_fallthru
      _
    // Predicated region
    $region10: #{tpu_custom_call.1} parent=1 // pred_check
      _
    $region11: #{tpu_custom_call.1} parent=1 // pred_check_branch
      %38 = sbr.rel (0) target = $region13
    $region12: #{tpu_custom_call.1} parent=1 // pred_region
      _
    $region13: #{tpu_custom_call.1} parent=1 // pred_fallthru
      _
    // Predicated region
    $region14: #{tpu_custom_call.1} parent=1 // pred_check
      _
    $region15: #{tpu_custom_call.1} parent=1 // pred_check_branch
      %40 = sbr.rel (0) target = $region17
    $region16: #{tpu_custom_call.1} parent=1 // pred_region
      %42 = vsyncadd [#allocation8], 0
      %s43 = sshll.u32 %s3, 4
      %s44 = int_to_ptr.hbm [resolvable:$true] %s43
      %s45 = sshll.u32 [#allocation9], 4
      %s46 = int_to_ptr.vmem [resolvable:$true] %s45
      %51 = dma.hbm_to_vmem [thread:$0]  %s44, 512, %s46, [#allocation8], 128, 128, 8
    $region17: #{tpu_custom_call.1} parent=1 // pred_fallthru
      _
    // Predicated region
    $region18: #{tpu_custom_call.1} parent=1 // pred_check
      _
    $region19: #{tpu_custom_call.1} parent=1 // pred_check_branch
      %53 = sbr.rel (0) target = $region21
    $region20: #{tpu_custom_call.1} parent=1 // pred_region
      _
    $region21: #{tpu_custom_call.1} parent=1 // pred_fallthru
      _
    // Predicated region
    $region22: #{tpu_custom_call.1} parent=1 // pred_check
      _
    $region23: #{tpu_custom_call.1} parent=1 // pred_check_branch
      %55 = sbr.rel (0) target = $region25
    $region24: #{tpu_custom_call.1} parent=1 // pred_region
      %57 = dma.done [#allocation5], 256
    $region25: #{tpu_custom_call.1} parent=1 // pred_fallthru
      _
    // Predicated region
    $region26: #{tpu_custom_call.1} parent=1 // pred_check
      _
    $region27: #{tpu_custom_call.1} parent=1 // pred_check_branch
      %59 = sbr.rel (0) target = $region29
    $region28: #{tpu_custom_call.1} parent=1 // pred_region
      %61 = dma.done [#allocation8], 16
    $region29: #{tpu_custom_call.1} parent=1 // pred_fallthru
      _
    // Predicated region
    $region30: #{tpu_custom_call.1} parent=1 // pred_check
      _
    $region31: #{tpu_custom_call.1} parent=1 // pred_check_branch
      %63 = sbr.rel (0) target = $region33
    $region32: #{tpu_custom_call.1} parent=1 // pred_region
      %65 = dma.done [#allocation8], 512
    $region33: #{tpu_custom_call.1} parent=1 // pred_fallthru
      _
    %p66 = scmp.eq.s32.totalorder 0, 0
    // Predicated region
    $region34: #{tpu_custom_call.1} parent=1 // pred_check
      %p67 = pneg %p66
    $region35: #{tpu_custom_call.1} parent=1 // pred_check_branch
      %69 = sbr.rel (%p67) target = $region37
    $region36: #{tpu_custom_call.1} parent=1 // pred_region
      %v70 = vld [vmem:[#allocation4] sm:$0xff]
      %v71 = vld [vmem:[#allocation4 + $0x8] sm:$0xff]
      %vm72 = vcmask 261120
      %v73 = vsel %vm72, %v70, 0.0
      %74 = vadd.xlane.f32.xlu0 %v73
      %v75 = vpop.xlane.xlu0 %74
      %v76 = vsel %vm72, %v71, 0.0
      %77 = vadd.xlane.f32.xlu0 %v76
      %v78 = vpop.xlane.xlu0 %77
      %v79 = vrcp.pop 32.0
      %v80 = vmul.f32 32.0, %v79
      %v81 = vsub.f32 1.0, %v80
      %v82 = vmul.f32 %v79, %v81
      %v83 = vadd.f32 %v79, %v82
      %vm84 = vweird.f32 %v79
      %v85 = vsel %vm84, %v79, %v83
      %v86 = vmul.f32 %v75, %v85
      %v87 = vmul.f32 %v78, %v85
      %v88 = vsub.f32 %v70, %v86
      %v89 = vsub.f32 %v71, %v87
      %v90 = vmul.f32 %v88, %v88
      %v91 = vmul.f32 %v89, %v89
      %v92 = vsel %vm72, %v90, 0.0
      %93 = vadd.xlane.f32.xlu0 %v92
      %v94 = vpop.xlane.xlu0 %93
      %v95 = vsel %vm72, %v91, 0.0
      %96 = vadd.xlane.f32.xlu0 %v95
      %v97 = vpop.xlane.xlu0 %96
      %v98 = vrcp.pop 31.0
      %v99 = vmul.f32 31.0, %v98
      %v100 = vsub.f32 1.0, %v99
      %v101 = vmul.f32 %v98, %v100
      %v102 = vadd.f32 %v98, %v101
      %vm103 = vweird.f32 %v98
      %v104 = vsel %vm103, %v98, %v102
      %v105 = vmul.f32 %v94, %v104
      %v106 = vmul.f32 %v97, %v104
      %v107 = vrsqrt.pop %v105
      %v108 = vmul.f32 %v107, %v105
      %v109 = vmul.f32 %v108, %v107
      %v110 = vmul.f32 0.5, %v109
      %v111 = vsub.f32 1.5, %v110
      %v112 = vmul.f32 %v107, %v111
      %v113 = vmul.f32 %v105, %v112
      %vm114 = vcmp.eq.f32.partialorder %v105, inf
      %v115 = vsel %vm114, %v105, %v113
      %vm116 = vcmp.eq.f32.partialorder %v105, 0.0
      %v117 = vand.u32 %v105, 2147483648
      %v118 = vsel %vm116, %v117, %v115
      %v119 = vrsqrt.pop %v106
      %v120 = vmul.f32 %v119, %v106
      %v121 = vmul.f32 %v120, %v119
      %v122 = vmul.f32 0.5, %v121
      %v123 = vsub.f32 1.5, %v122
      %v124 = vmul.f32 %v119, %v123
      %v125 = vmul.f32 %v106, %v124
      %vm126 = vcmp.eq.f32.partialorder %v106, inf
      %v127 = vsel %vm126, %v106, %v125
      %vm128 = vcmp.eq.f32.partialorder %v106, 0.0
      %v129 = vand.u32 %v106, 2147483648
      %v130 = vsel %vm128, %v129, %v127
      %v131 = vadd.f32 %v118, 1e-06
      %v132 = vadd.f32 %v130, 1e-06
      %v133 = vrcp.pop %v131
      %v134 = vrcp.pop %v132
      %v135 = vmul.f32 %v88, %v133
      %v136 = vmul.f32 %v89, %v134
      %v137 = vld [vmem:[#allocation7] sm:$0x1]
      %v139 = vperm.slane %v137, 0
      %v141 = vmul.f32 %v135, %v139
      %v142 = vmul.f32 %v136, %v139
      %v143 = vld [vmem:[%s2] sm:$0x1]
      %v145 = vperm.slane %v143, 0
      %v147 = vadd.f32 %v141, %v145
      %v148 = vadd.f32 %v142, %v145
      %149 = vst.msk [vmem:[#allocation2] sm:$0xff] %vm72, %v147
      %150 = vst.msk [vmem:[#allocation2 + $0x8] sm:$0xff] %vm72, %v148
      %151 = vst.msk [vmem:[#allocation3] sm:$0xff] %vm72, 0.0
      %152 = vst.msk [vmem:[#allocation3 + $0x8] sm:$0xff] %vm72, 0.0
    $region37: #{tpu_custom_call.1} parent=1 // pred_fallthru
      _
    %v153 = vld [vmem:[#allocation2] sm:$0xff]
    %v154 = vld [vmem:[#allocation2 + $0x8] sm:$0xff]
    %v155 = vld [vmem:[#allocation3] sm:$0xff]
    %v156 = vld [vmem:[#allocation3 + $0x8] sm:$0xff]
    %v157 = vld [vmem:[#allocation9] sm:$0xff]
    %v158 = vld [vmem:[#allocation9 + $0x8] sm:$0xff]
    %v159 = vld [vmem:[#allocation9 + $0x10] sm:$0xff]
    %v160 = vld [vmem:[#allocation9 + $0x18] sm:$0xff]
    %vm161 = vcmask 261120
    %v163 = vsel %vm161, %v153, 0
    %v166 = vsel %vm161, %v154, 0
    %168 = vmatpush.msra.mxu0 0.0
    %169 = vmatpush.msra.mxu0 0.0
    %170 = vmatpush.msra.mxu0 0.0
    %171 = vmatpush.msra.mxu0 0.0
    %172 = vmatpush.msra.mxu0 0.0
    %173 = vmatpush.msra.mxu0 0.0
    %174 = vmatpush.msra.mxu0 0.0
    %175 = vmatpush.msra.mxu0 0.0
    %176 = vmatpush.msra.mxu0 0.0
    %177 = vmatpush.msra.mxu0 0.0
    %178 = vmatpush.msra.mxu0 0.0
    %179 = vmatpush.msra.mxu0 0.0
    %180 = vmatpush.msra.mxu0 %v160
    %181 = vmatpush.msra.mxu0 %v159
    %182 = vmatpush.msra.mxu0 %v158
    %183 = vmatpush.msra.mxu0 %v157
    %184 = vmatmul.f32.gmra.mxu0 %v163
    %v185 = vpop.f32.mrf.mxu0
    %v186 = vadd.f32 0.0, %v185
    %187 = vmatmul.f32.gmra.mxu0 %v166
    %v188 = vpop.f32.mrf.mxu0
    %v189 = vadd.f32 0.0, %v188
    %190 = vdwg.mxu0
    %v191 = vadd.f32 %v155, %v186
    %v192 = vadd.f32 %v156, %v189
    %193 = vst.msk [vmem:[#allocation3] sm:$0xff] %vm161, %v191
    %194 = vst.msk [vmem:[#allocation3 + $0x8] sm:$0xff] %vm161, %v192
    // Predicated region
    $region38: #{tpu_custom_call.1} parent=1 // pred_check
      %p195 = pneg %p66
    $region39: #{tpu_custom_call.1} parent=1 // pred_check_branch
      %197 = sbr.rel (%p195) target = $region41
    $region40: #{tpu_custom_call.1} parent=1 // pred_region
      %v198 = vld [vmem:[#allocation4] sm:$0xff]
      %v199 = vld [vmem:[#allocation4 + $0x8] sm:$0xff]
      %v200 = vld [vmem:[#allocation3] sm:$0xff]
      %v201 = vld [vmem:[#allocation3 + $0x8] sm:$0xff]
      %v202 = vadd.f32 %v198, %v200
      %v203 = vadd.f32 %v199, %v201
      %v204 = vld [vmem:[%s4] sm:$0x1]
      %v206 = vperm.slane %v204, 0
      %v208 = vadd.f32 %v202, %v206
      %v209 = vadd.f32 %v203, %v206
      %210 = vst.msk [vmem:[#allocation10] sm:$0xff] %vm161, %v208
      %211 = vst.msk [vmem:[#allocation10 + $0x8] sm:$0xff] %vm161, %v209
    $region41: #{tpu_custom_call.1} parent=1 // pred_fallthru
      _
    // Predicated region
    $region42: #{tpu_custom_call.1} parent=1 // pred_check
      _
    $region43: #{tpu_custom_call.1} parent=1 // pred_check_branch
      %213 = sbr.rel (0) target = $region45
    $region44: #{tpu_custom_call.1} parent=1 // pred_region
      %215 = vsyncadd [#allocation6], 0
      %s216 = sshll.u32 [#allocation10], 4
      %s217 = int_to_ptr.vmem [resolvable:$true] %s216
      %s218 = sshll.u32 %s5, 4
      %s219 = int_to_ptr.hbm [resolvable:$true] %s218
      %224 = dma.vmem_to_hbm [thread:$0]  %s217, 256, %s219, [#allocation6], 128, 128, 8
    $region45: #{tpu_custom_call.1} parent=1 // pred_fallthru
      _
    // Predicated region
    $region46: #{tpu_custom_call.1} parent=1 // pred_check
      _
    $region47: #{tpu_custom_call.1} parent=1 // pred_check_branch
      %226 = sbr.rel (0) target = $region49
    $region48: #{tpu_custom_call.1} parent=1 // pred_region
      %228 = dma.done [#allocation6], 256
    $region49: #{tpu_custom_call.1} parent=1 // pred_fallthru
      _
    %229 = vsyncpa [#allocation5], 1
    %230 = vsyncpa [#allocation8], 1
    %231 = vsyncpa [#allocation6], 1

</llo_original>
